<compile_context>
chip_gen: v7x
topology: tpu7x:2x2x1
jax: 0.10.0
libtpu: 0.0.40
codegen_flags: <defaults>
</compile_context>

<pallas_src>
import functools

import jax
import jax.numpy as jnp
from jax import lax
from jax.experimental import pallas as pl
from jax.experimental.pallas import tpu as pltpu


# ----------------------------------------------------------------------------------
# Glue: simple Gaussian psf_model (params columns: [x, y, I, bg, ...]) -> mu (nspots,H,W)
# ----------------------------------------------------------------------------------
def gaussian_psf_model(params_, H, W, sigma=2.0):
    x = params_[:, 0][:, None, None]
    y = params_[:, 1][:, None, None]
    I = params_[:, 2][:, None, None]
    bg = params_[:, 3][:, None, None]
    yy, xx = jnp.meshgrid(jnp.arange(H, dtype=jnp.float32) + 0.5,
                          jnp.arange(W, dtype=jnp.float32) + 0.5, indexing="ij")
    g = jnp.exp(-((xx[None] - x) ** 2 + (yy[None] - y) ** 2) / (2.0 * sigma * sigma))
    g = g / (2.0 * jnp.pi * sigma * sigma)
    return I * g + bg  # mu; jacobian of the psf_model is unused by IntensityEstimator


def _round_up(x, m):
    return -(-x // m) * m


# ----------------------------------------------------------------------------------
# Pallas kernel: per-sample 2-parameter (I, bg) Poisson LM-MLE + CRLB + chi-square.
# Inputs : psf (TN, P), smp (TN, P), init (TN, 2)
# Output : fused (TN, 8) slab: [I, bg, crlb_I, crlb_bg, chisq, 0, 0, 0]
# ----------------------------------------------------------------------------------
def _lm_mle_ibg_kernel(psf_ref, smp_ref, init_ref, out_ref,
                       *, iterations, lambda_):
    psf = psf_ref[...]                      # (TN, P)
    smp = smp_ref[...]                      # (TN, P)

    # param_range from the module __init__: I in [1, 1e6], bg in [1, 1e3]
    I_MIN, I_MAX = 1.0, 1.0e6
    BG_MIN, BG_MAX = 1.0, 1.0e3

    # Clip the initial estimate into the parameter range before iterating:
    # initial bg is 0 in the reference setup, and mu ~= 0 at patch-edge pixels
    # would otherwise produce ~1e18-scale af terms in the first update.
    I0 = jnp.clip(init_ref[:, 0:1], I_MIN, I_MAX)    # (TN, 1)
    bg0 = jnp.clip(init_ref[:, 1:2], BG_MIN, BG_MAX)  # (TN, 1)

    def body(_, carry):
        I, bg = carry
        mu = I * psf + bg                                      # IntensityAndBgModel
        # per-pixel divide -> EUP approx reciprocal (frees the VALU slot)
        invmu = pl.reciprocal(jnp.maximum(mu, 1e-6), approx=True)
        r = smp * invmu
        smi = r - 1.0                                          # gradient weights
        af = r * invmu                                         # Fisher weights
        t = psf * af
        # alpha (Fisher approx) and beta (gradient) for the 2x2 system
        a00 = jnp.sum(psf * t, axis=1, keepdims=True)
        a01 = jnp.sum(t, axis=1, keepdims=True)
        a11 = jnp.sum(af, axis=1, keepdims=True)
        b0 = jnp.sum(psf * smi, axis=1, keepdims=True)
        b1 = jnp.sum(smi, axis=1, keepdims=True)
        # scale-invariant LM damping (smlmtorch lm_update style)
        s0 = a00 * a00 + a01 * a01
        s1 = a01 * a01 + a11 * a11
        inv_smean = pl.reciprocal(jnp.maximum(0.5 * (s0 + s1), 1e-30), approx=True)
        A00 = a00 + lambda_ * (s0 * inv_smean)
        A11 = a11 + lambda_ * (s1 * inv_smean)
        # closed-form 2x2 solve (guard degenerate determinant)
        det = jnp.maximum(A00 * A11 - a01 * a01, 1e-30)
        invdet = pl.reciprocal(det, approx=True)
        dI = (A11 * b0 - a01 * b1) * invdet
        dbg = (A00 * b1 - a01 * b0) * invdet
        I = jnp.clip(I + dI, I_MIN, I_MAX)
        bg = jnp.clip(bg + dbg, BG_MIN, BG_MAX)
        return I, bg

    I, bg = lax.fori_loop(0, iterations, body, (I0, bg0))

    # poisson CRLB from final mu and per-pixel derivatives (psf, 1) — exact math,
    # outside the hot loop.
    mu = I * psf + bg
    invmu = 1.0 / mu
    f00 = jnp.sum(psf * (psf * invmu), axis=1, keepdims=True)
    f01 = jnp.sum(psf * invmu, axis=1, keepdims=True)
    f11 = jnp.sum(invmu, axis=1, keepdims=True)
    detf = jnp.maximum(f00 * f11 - f01 * f01, 1e-30)
    inv_detf = 1.0 / detf
    crlb_I = jnp.sqrt(f11 * inv_detf)
    crlb_bg = jnp.sqrt(f00 * inv_detf)

    # chi-square
    resid = smp - mu
    chisq = jnp.sum(resid * resid / (mu + 0.01), axis=1, keepdims=True)

    # single fused output slab
    out_ref[:, 0:1] = I
    out_ref[:, 1:2] = bg
    out_ref[:, 2:3] = crlb_I
    out_ref[:, 3:4] = crlb_bg
    out_ref[:, 4:5] = chisq
    out_ref[:, 5:8] = jnp.zeros((psf.shape[0], 3), jnp.float32)


def _ibg_fit_pallas(psf, samples_t, initial_t, iterations, lambda_):
    """psf: (nspots, P); samples_t: (patterns, nspots, P); initial_t: (patterns, nspots, 2)."""
    patterns, nspots, P = samples_t.shape

    # Row tiling: large tiles so the LM loop has plenty of independent sublane work,
    # capped at 1024 rows (~12 MiB live VMEM incl. double-buffered inputs — safe on
    # v7x's 64 MiB as well as v5e/v6e).
    TN_TARGET = 1024
    ns8 = _round_up(nspots, 8)
    TN = ns8 if ns8 <= TN_TARGET else TN_TARGET
    Nspad = _round_up(nspots, TN)
    if Nspad != nspots:
        pad = Nspad - nspots
        psf = jnp.pad(psf, ((0, pad), (0, 0)), mode="edge")
        samples_t = jnp.pad(samples_t, ((0, 0), (0, pad), (0, 0)), mode="edge")
        initial_t = jnp.pad(initial_t, ((0, 0), (0, pad), (0, 0)), mode="edge")

    smp_flat = samples_t.reshape(patterns * Nspad, P)
    init_flat = initial_t.reshape(patterns * Nspad, 2)
    n_spot_tiles = Nspad // TN

    kernel = functools.partial(_lm_mle_ibg_kernel,
                               iterations=iterations, lambda_=lambda_)

    out = pl.pallas_call(
        kernel,
        out_shape=jax.ShapeDtypeStruct((patterns * Nspad, 8), jnp.float32),
        grid=(n_spot_tiles, patterns),
        in_specs=[
            # PSF block depends only on the spot-tile index -> stays resident in VMEM
            # across the inner pattern axis (no patterns-x replication through HBM).
            pl.BlockSpec((TN, P), lambda s, p: (s, 0)),
            pl.BlockSpec((TN, P), lambda s, p: (p * n_spot_tiles + s, 0)),
            pl.BlockSpec((TN, 2), lambda s, p: (p * n_spot_tiles + s, 0)),
        ],
        out_specs=pl.BlockSpec((TN, 8), lambda s, p: (p * n_spot_tiles + s, 0)),
        compiler_params=pltpu.CompilerParams(
            dimension_semantics=("parallel", "parallel"),
            vmem_limit_bytes=32 * 1024 * 1024),
    )(psf, smp_flat, init_flat)

    out = out.reshape(patterns, Nspad, 8)[:, :nspots]   # (patterns, nspots, 8)
    out = jnp.transpose(out, (1, 0, 2))                 # (nspots, patterns, 8)
    return out[..., 0:2], out[..., 2:4], out[..., 4]


# ----------------------------------------------------------------------------------
# IntensityEstimator.forward
# ----------------------------------------------------------------------------------
def intensity_estimator_forward(params, data, *,
                                ibg_param_ix=(2, 3), iterations=50, lambda_=100.0):
    nspots, patterns, H, W = data.shape
    P = H * W
    data = data.astype(jnp.float32)
    params = params.astype(jnp.float32)

    # params_ = params with I:=1, bg:=0  -> unit-intensity, zero-bg PSF
    params_ = params.at[:, ibg_param_ix[0]].set(1.0).at[:, ibg_param_ix[1]].set(0.0)
    psf = gaussian_psf_model(params_, H, W).reshape(nspots, P)      # (nspots, P)

    # pattern-major sample layout so one PSF block serves all `patterns` samples
    samples_t = jnp.transpose(data.reshape(nspots, patterns, P), (1, 0, 2))

    # initial_ibg: the reference code assigns column 0 twice; the second assignment
    # (params[:, 4] / patterns) is the one that survives, column 1 stays 0.
    initial = jnp.zeros((nspots, patterns, 2), jnp.float32)
    initial = initial.at[:, :, 0].set(params[:, 4, None] / patterns)
    initial_t = jnp.transpose(initial, (1, 0, 2))                   # (patterns, nspots, 2)

    estim, crlb, chisq = _ibg_fit_pallas(psf, samples_t, initial_t,
                                         iterations, lambda_)
    return estim, crlb, chisq                                       # shapes (n,p,2),(n,p,2),(n,p)


if __name__ == "__main__":
    key = jax.random.PRNGKey(0)
    nspots, patterns, H, W = 4, 2, 16, 16

    k1, k2, k3, k4 = jax.random.split(key, 4)
    x = 8.0 + jax.random.uniform(k1, (nspots,), minval=-1.0, maxval=1.0)
    y = 8.0 + jax.random.uniform(k2, (nspots,), minval=-1.0, maxval=1.0)
    I_true = 2000.0 + 500.0 * jax.random.uniform(k3, (nspots,))
    bg_true = jnp.full((nspots,), 5.0)
    # params columns: [x, y, I, bg, total-intensity-estimate]
    params = jnp.stack([x, y, I_true, bg_true, I_true], axis=1)

    # synthetic Poisson data per pattern
    unit_params = params.at[:, 2].set(1.0).at[:, 3].set(0.0)
    psf_true = gaussian_psf_model(unit_params, H, W)                # (nspots,H,W)
    lam = (I_true[:, None, None, None] / patterns) * psf_true[:, None] \
        + bg_true[:, None, None, None]
    data = jax.random.poisson(k4, lam, shape=(nspots, patterns, H, W)).astype(jnp.float32)

    fwd = jax.jit(intensity_estimator_forward)
    estim, crlb, chisq = fwd(params, data)
    jax.block_until_ready((estim, crlb, chisq))

    assert estim.shape == (nspots, patterns, 2)
    assert crlb.shape == (nspots, patterns, 2)
    assert chisq.shape == (nspots, patterns)
    assert bool(jnp.all(jnp.isfinite(estim)) & jnp.all(jnp.isfinite(crlb))
                & jnp.all(jnp.isfinite(chisq)))
    print("KERNEL_OK")
</pallas_src>

<mosaic_0001>
module attributes {stable_mosaic.version = 11 : i64} {
  func.func @_lm_mle_ibg_kernel(%arg0: i32, %arg1: i32, %arg2: memref<8x256xf32, #tpu.memory_space<vmem>>, %arg3: memref<8x256xf32, #tpu.memory_space<vmem>>, %arg4: memref<8x2xf32, #tpu.memory_space<vmem>>, %arg5: memref<8x8xf32, #tpu.memory_space<vmem>>) attributes {dimension_semantics = [#tpu.dimension_semantics<parallel>, #tpu.dimension_semantics<parallel>], iteration_bounds = array<i64: 1, 2>, scalar_prefetch = 0 : i64, scratch_operands = 0 : i64, tpu.core_type = #tpu.core_type<tc>, window_params = [{transform_indices = @transform_0, window_bounds = array<i64: 8, 256>}, {transform_indices = @transform_1, window_bounds = array<i64: 8, 256>}, {transform_indices = @transform_2, window_bounds = array<i64: 8, 2>}, {transform_indices = @transform_3, window_bounds = array<i64: 8, 8>}]} {
    %c0 = arith.constant 0 : index
    %c0_0 = arith.constant 0 : index
    %0 = vector.load %arg2[%c0, %c0_0] : memref<8x256xf32, #tpu.memory_space<vmem>>, vector<8x256xf32>
    %c0_1 = arith.constant 0 : index
    %c0_2 = arith.constant 0 : index
    %1 = vector.load %arg3[%c0_1, %c0_2] : memref<8x256xf32, #tpu.memory_space<vmem>>, vector<8x256xf32>
    %c0_3 = arith.constant 0 : index
    %c0_4 = arith.constant 0 : index
    %2 = vector.load %arg4[%c0_3, %c0_4] : memref<8x2xf32, #tpu.memory_space<vmem>>, vector<8x1xf32>
    %cst = arith.constant 1.000000e+00 : f32
    %cst_5 = arith.constant 1.000000e+06 : f32
    %3 = vector.broadcast %cst : f32 to vector<8x1xf32>
    %4 = arith.maximumf %3, %2 : vector<8x1xf32>
    %5 = vector.broadcast %cst_5 : f32 to vector<8x1xf32>
    %6 = arith.minimumf %5, %4 : vector<8x1xf32>
    %c0_6 = arith.constant 0 : index
    %c1 = arith.constant 1 : index
    %7 = vector.load %arg4[%c0_6, %c1] : memref<8x2xf32, #tpu.memory_space<vmem>>, vector<8x1xf32>
    %cst_7 = arith.constant 1.000000e+00 : f32
    %cst_8 = arith.constant 1.000000e+03 : f32
    %8 = vector.broadcast %cst_7 : f32 to vector<8x1xf32>
    %9 = arith.maximumf %8, %7 : vector<8x1xf32>
    %10 = vector.broadcast %cst_8 : f32 to vector<8x1xf32>
    %11 = arith.minimumf %10, %9 : vector<8x1xf32>
    %c0_i32 = arith.constant 0 : i32
    %c50_i32 = arith.constant 50 : i32
    %12 = arith.addi %c0_i32, %c50_i32 : i32
    %c1_i32 = arith.constant 1 : i32
    %13:2 = scf.for %arg6 = %c0_i32 to %12 step %c1_i32 iter_args(%arg7 = %6, %arg8 = %11) -> (vector<8x1xf32>, vector<8x1xf32>)  : i32 {
      %54 = vector.broadcast %arg7 : vector<8x1xf32> to vector<8x256xf32>
      %55 = arith.mulf %54, %0 : vector<8x256xf32>
      %56 = vector.broadcast %arg8 : vector<8x1xf32> to vector<8x256xf32>
      %57 = arith.addf %55, %56 : vector<8x256xf32>
      %cst_26 = arith.constant 9.99999997E-7 : f32
      %58 = vector.broadcast %cst_26 : f32 to vector<8x256xf32>
      %59 = arith.maximumf %57, %58 : vector<8x256xf32>
      %60 = tpu.reciprocal %59 {approx = true} : vector<8x256xf32> -> vector<8x256xf32>
      %61 = arith.mulf %1, %60 : vector<8x256xf32>
      %cst_27 = arith.constant 1.000000e+00 : f32
      %62 = vector.broadcast %cst_27 : f32 to vector<8x256xf32>
      %63 = arith.subf %61, %62 : vector<8x256xf32>
      %64 = arith.mulf %61, %60 : vector<8x256xf32>
      %65 = arith.mulf %0, %64 : vector<8x256xf32>
      %66 = arith.mulf %0, %65 : vector<8x256xf32>
      %cst_28 = arith.constant dense<0.000000e+00> : vector<8xf32>
      %67 = vector.multi_reduction <add>, %66, %cst_28 [1] : vector<8x256xf32> to vector<8xf32>
      %68 = vector.shape_cast %67 : vector<8xf32> to vector<8x1xf32>
      %cst_29 = arith.constant dense<0.000000e+00> : vector<8xf32>
      %69 = vector.multi_reduction <add>, %65, %cst_29 [1] : vector<8x256xf32> to vector<8xf32>
      %70 = vector.shape_cast %69 : vector<8xf32> to vector<8x1xf32>
      %cst_30 = arith.constant dense<0.000000e+00> : vector<8xf32>
      %71 = vector.multi_reduction <add>, %64, %cst_30 [1] : vector<8x256xf32> to vector<8xf32>
      %72 = vector.shape_cast %71 : vector<8xf32> to vector<8x1xf32>
      %73 = arith.mulf %0, %63 : vector<8x256xf32>
      %cst_31 = arith.constant dense<0.000000e+00> : vector<8xf32>
      %74 = vector.multi_reduction <add>, %73, %cst_31 [1] : vector<8x256xf32> to vector<8xf32>
      %75 = vector.shape_cast %74 : vector<8xf32> to vector<8x1xf32>
      %cst_32 = arith.constant dense<0.000000e+00> : vector<8xf32>
      %76 = vector.multi_reduction <add>, %63, %cst_32 [1] : vector<8x256xf32> to vector<8xf32>
      %77 = vector.shape_cast %76 : vector<8xf32> to vector<8x1xf32>
      %78 = arith.mulf %68, %68 : vector<8x1xf32>
      %79 = arith.mulf %70, %70 : vector<8x1xf32>
      %80 = arith.addf %78, %79 : vector<8x1xf32>
      %81 = arith.mulf %70, %70 : vector<8x1xf32>
      %82 = arith.mulf %72, %72 : vector<8x1xf32>
      %83 = arith.addf %81, %82 : vector<8x1xf32>
      %84 = arith.addf %80, %83 : vector<8x1xf32>
      %cst_33 = arith.constant 5.000000e-01 : f32
      %85 = vector.broadcast %cst_33 : f32 to vector<8x1xf32>
      %86 = arith.mulf %85, %84 : vector<8x1xf32>
      %cst_34 = arith.constant 1.000000e-30 : f32
      %87 = vector.broadcast %cst_34 : f32 to vector<8x1xf32>
      %88 = arith.maximumf %86, %87 : vector<8x1xf32>
      %89 = tpu.reciprocal %88 {approx = true} : vector<8x1xf32> -> vector<8x1xf32>
      %90 = arith.mulf %80, %89 : vector<8x1xf32>
      %cst_35 = arith.constant 1.000000e+02 : f32
      %91 = vector.broadcast %cst_35 : f32 to vector<8x1xf32>
      %92 = arith.mulf %91, %90 : vector<8x1xf32>
      %93 = arith.addf %68, %92 : vector<8x1xf32>
      %94 = arith.mulf %83, %89 : vector<8x1xf32>
      %cst_36 = arith.constant 1.000000e+02 : f32
      %95 = vector.broadcast %cst_36 : f32 to vector<8x1xf32>
      %96 = arith.mulf %95, %94 : vector<8x1xf32>
      %97 = arith.addf %72, %96 : vector<8x1xf32>
      %98 = arith.mulf %93, %97 : vector<8x1xf32>
      %99 = arith.mulf %70, %70 : vector<8x1xf32>
      %100 = arith.subf %98, %99 : vector<8x1xf32>
      %cst_37 = arith.constant 1.000000e-30 : f32
      %101 = vector.broadcast %cst_37 : f32 to vector<8x1xf32>
      %102 = arith.maximumf %100, %101 : vector<8x1xf32>
      %103 = tpu.reciprocal %102 {approx = true} : vector<8x1xf32> -> vector<8x1xf32>
      %104 = arith.mulf %97, %75 : vector<8x1xf32>
      %105 = arith.mulf %70, %77 : vector<8x1xf32>
      %106 = arith.subf %104, %105 : vector<8x1xf32>
      %107 = arith.mulf %106, %103 : vector<8x1xf32>
      %108 = arith.mulf %93, %77 : vector<8x1xf32>
      %109 = arith.mulf %70, %75 : vector<8x1xf32>
      %110 = arith.subf %108, %109 : vector<8x1xf32>
      %111 = arith.mulf %110, %103 : vector<8x1xf32>
      %112 = arith.addf %arg7, %107 : vector<8x1xf32>
      %cst_38 = arith.constant 1.000000e+00 : f32
      %cst_39 = arith.constant 1.000000e+06 : f32
      %113 = vector.broadcast %cst_38 : f32 to vector<8x1xf32>
      %114 = arith.maximumf %113, %112 : vector<8x1xf32>
      %115 = vector.broadcast %cst_39 : f32 to vector<8x1xf32>
      %116 = arith.minimumf %115, %114 : vector<8x1xf32>
      %117 = arith.addf %arg8, %111 : vector<8x1xf32>
      %cst_40 = arith.constant 1.000000e+00 : f32
      %cst_41 = arith.constant 1.000000e+03 : f32
      %118 = vector.broadcast %cst_40 : f32 to vector<8x1xf32>
      %119 = arith.maximumf %118, %117 : vector<8x1xf32>
      %120 = vector.broadcast %cst_41 : f32 to vector<8x1xf32>
      %121 = arith.minimumf %120, %119 : vector<8x1xf32>
      scf.yield %116, %121 : vector<8x1xf32>, vector<8x1xf32>
    }
    %14 = vector.broadcast %13#0 : vector<8x1xf32> to vector<8x256xf32>
    %15 = arith.mulf %14, %0 : vector<8x256xf32>
    %16 = vector.broadcast %13#1 : vector<8x1xf32> to vector<8x256xf32>
    %17 = arith.addf %15, %16 : vector<8x256xf32>
    %cst_9 = arith.constant 1.000000e+00 : f32
    %18 = vector.broadcast %cst_9 : f32 to vector<8x256xf32>
    %19 = arith.divf %18, %17 : vector<8x256xf32>
    %20 = arith.mulf %0, %19 : vector<8x256xf32>
    %21 = arith.mulf %0, %20 : vector<8x256xf32>
    %cst_10 = arith.constant dense<0.000000e+00> : vector<8xf32>
    %22 = vector.multi_reduction <add>, %21, %cst_10 [1] : vector<8x256xf32> to vector<8xf32>
    %23 = vector.shape_cast %22 : vector<8xf32> to vector<8x1xf32>
    %24 = arith.mulf %0, %19 : vector<8x256xf32>
    %cst_11 = arith.constant dense<0.000000e+00> : vector<8xf32>
    %25 = vector.multi_reduction <add>, %24, %cst_11 [1] : vector<8x256xf32> to vector<8xf32>
    %26 = vector.shape_cast %25 : vector<8xf32> to vector<8x1xf32>
    %cst_12 = arith.constant dense<0.000000e+00> : vector<8xf32>
    %27 = vector.multi_reduction <add>, %19, %cst_12 [1] : vector<8x256xf32> to vector<8xf32>
    %28 = vector.shape_cast %27 : vector<8xf32> to vector<8x1xf32>
    %29 = arith.mulf %23, %28 : vector<8x1xf32>
    %30 = arith.mulf %26, %26 : vector<8x1xf32>
    %31 = arith.subf %29, %30 : vector<8x1xf32>
    %cst_13 = arith.constant 1.000000e-30 : f32
    %32 = vector.broadcast %cst_13 : f32 to vector<8x1xf32>
    %33 = arith.maximumf %31, %32 : vector<8x1xf32>
    %cst_14 = arith.constant 1.000000e+00 : f32
    %34 = vector.broadcast %cst_14 : f32 to vector<8x1xf32>
    %35 = arith.divf %34, %33 : vector<8x1xf32>
    %36 = arith.mulf %28, %35 : vector<8x1xf32>
    %37 = math.sqrt %36 : vector<8x1xf32>
    %38 = arith.mulf %23, %35 : vector<8x1xf32>
    %39 = math.sqrt %38 : vector<8x1xf32>
    %40 = arith.subf %1, %17 : vector<8x256xf32>
    %41 = arith.mulf %40, %40 : vector<8x256xf32>
    %cst_15 = arith.constant 0.00999999977 : f32
    %42 = vector.broadcast %cst_15 : f32 to vector<8x256xf32>
    %43 = arith.addf %17, %42 : vector<8x256xf32>
    %44 = arith.divf %41, %43 : vector<8x256xf32>
    %cst_16 = arith.constant dense<0.000000e+00> : vector<8xf32>
    %45 = vector.multi_reduction <add>, %44, %cst_16 [1] : vector<8x256xf32> to vector<8xf32>
    %46 = vector.shape_cast %45 : vector<8xf32> to vector<8x1xf32>
    %c0_17 = arith.constant 0 : index
    %c0_18 = arith.constant 0 : index
    %47 = vector.load %arg5[%c0_17, %c0_18] : memref<8x8xf32, #tpu.memory_space<vmem>>, vector<8x1xf32>
    tpu.vector_store %arg5[%c0_17, %c0_18], %13#0 {strides = array<i32>} : memref<8x8xf32, #tpu.memory_space<vmem>>, vector<8x1xf32>,
    %c0_19 = arith.constant 0 : index
    %c1_20 = arith.constant 1 : index
    %48 = vector.load %arg5[%c0_19, %c1_20] : memref<8x8xf32, #tpu.memory_space<vmem>>, vector<8x1xf32>
    tpu.vector_store %arg5[%c0_19, %c1_20], %13#1 {strides = array<i32>} : memref<8x8xf32, #tpu.memory_space<vmem>>, vector<8x1xf32>,
    %c0_21 = arith.constant 0 : index
    %c2 = arith.constant 2 : index
    %49 = vector.load %arg5[%c0_21, %c2] : memref<8x8xf32, #tpu.memory_space<vmem>>, vector<8x1xf32>
    tpu.vector_store %arg5[%c0_21, %c2], %37 {strides = array<i32>} : memref<8x8xf32, #tpu.memory_space<vmem>>, vector<8x1xf32>,
    %c0_22 = arith.constant 0 : index
    %c3 = arith.constant 3 : index
    %50 = vector.load %arg5[%c0_22, %c3] : memref<8x8xf32, #tpu.memory_space<vmem>>, vector<8x1xf32>
    tpu.vector_store %arg5[%c0_22, %c3], %39 {strides = array<i32>} : memref<8x8xf32, #tpu.memory_space<vmem>>, vector<8x1xf32>,
    %c0_23 = arith.constant 0 : index
    %c4 = arith.constant 4 : index
    %51 = vector.load %arg5[%c0_23, %c4] : memref<8x8xf32, #tpu.memory_space<vmem>>, vector<8x1xf32>
    tpu.vector_store %arg5[%c0_23, %c4], %46 {strides = array<i32>} : memref<8x8xf32, #tpu.memory_space<vmem>>, vector<8x1xf32>,
    %cst_24 = arith.constant 0.000000e+00 : f32
    %52 = vector.broadcast %cst_24 : f32 to vector<8x3xf32>
    %c0_25 = arith.constant 0 : index
    %c5 = arith.constant 5 : index
    %53 = vector.load %arg5[%c0_25, %c5] : memref<8x8xf32, #tpu.memory_space<vmem>>, vector<8x3xf32>
    tpu.vector_store %arg5[%c0_25, %c5], %52 {strides = array<i32>} : memref<8x8xf32, #tpu.memory_space<vmem>>, vector<8x3xf32>,
    return
  }
  func.func @transform_0(%arg0: i32, %arg1: i32) -> (i32, i32) {
    %c0_i32 = arith.constant 0 : i32
    %c0_i32_0 = arith.constant 0 : i32
    return %arg0, %c0_i32 : i32, i32
  }
  func.func @transform_1(%arg0: i32, %arg1: i32) -> (i32, i32) {
    %c1_i32 = arith.constant 1 : i32
    %0 = arith.muli %arg1, %c1_i32 : i32
    %1 = arith.addi %0, %arg0 : i32
    %c0_i32 = arith.constant 0 : i32
    %c0_i32_0 = arith.constant 0 : i32
    return %1, %c0_i32 : i32, i32
  }
  func.func @transform_2(%arg0: i32, %arg1: i32) -> (i32, i32) {
    %c1_i32 = arith.constant 1 : i32
    %0 = arith.muli %arg1, %c1_i32 : i32
    %1 = arith.addi %0, %arg0 : i32
    %c0_i32 = arith.constant 0 : i32
    %c0_i32_0 = arith.constant 0 : i32
    return %1, %c0_i32 : i32, i32
  }
  func.func @transform_3(%arg0: i32, %arg1: i32) -> (i32, i32) {
    %c1_i32 = arith.constant 1 : i32
    %0 = arith.muli %arg1, %c1_i32 : i32
    %1 = arith.addi %0, %arg0 : i32
    %c0_i32 = arith.constant 0 : i32
    %c0_i32_0 = arith.constant 0 : i32
    return %1, %c0_i32 : i32, i32
  }
}

</mosaic_0001>

<llo_original>
// kernel: intensity_estimator_forward.1
$region0: #{intensity_estimator_forward.1}
  #allocation0 [shape = 'u32[]', space=smem, size = 0x4, offset = 0x4, fixed_abs, tag = 'smem constant byte address 0x4 - core index']
  #allocation1 [shape = 'u32[144,128]{1,0:T(1,128)}', space=vmem, size = 0x12000, scoped, tag = 'internal scratch']
  %s0 = inlined_call_operand.vmem [shape: f32[8,256], index: 0, kind: input, shape index: {}]
  %s1 = inlined_call_operand.vmem [shape: f32[16,256], index: 1, kind: input, shape index: {}]
  %s2 = inlined_call_operand.vmem [shape: f32[16,2], index: 2, kind: input, shape index: {}]
  %s3 = inlined_call_operand.vmem [shape: f32[16,8], index: 3, kind: output, shape index: {}]
  %s4 = sld [smem:[#allocation0]]
  $region52: #{intensity_estimator_forward.1} parent=0
    _
  %s6 = ssub.s32 1, %s4
  %s7 = scalar_select 0, %s6, %s4
  loop: start=0, step=1, limit=4
  $region2: #{intensity_estimator_forward.1} parent=0 // loop_pre_header
    _
  $region3: #{intensity_estimator_forward.1} parent=0 // loop_header
    %s9 = sphi 0, %s13
    %p10 = scmp.ge.s32.totalorder %s9, 4
    %s16 = sphi 0, %s28
    %s17 = sphi 0, %s24
    %s18 = sphi 0, %s16
    %s19 = sphi 0, %s17
    %s20 = sphi 0, %s18
    %s21 = sphi 0, %s19
    %s31 = sphi 0, %s33
    %s34 = sphi 0, %s31
    %s35 = sphi 0, %s34
    %s51 = sphi 0, %s35
    %s59 = sphi 0, %s61
    %s62 = sphi 0, %s59
    %s63 = sphi 0, %s62
    %s79 = sphi 0, %s63
    %s87 = sphi 0, %s89
    %s90 = sphi 0, %s87
    %s91 = sphi 0, %s90
    %s107 = sphi 0, %s91
    %s115 = sphi 0, %s117
    %s118 = sphi 0, %s115
    %s119 = sphi 0, %s118
    %s135 = sphi 0, %s119
  $region4: #{intensity_estimator_forward.1} parent=0 // loop_header_branch
    %12 = sbr.rel (%p10) target = $region8
  $region5: #{intensity_estimator_forward.1} parent=0 // loop_body
    %s14 = ssub.s32 %s9, 1
    %s15 = ssub.s32 %s9, 2
    %s22 = sadd.s32 1, %s17
    %p23 = scmp.ge.s32.totalorder %s22, 2
    %s24 = scalar_select %p23, 0, %s22
    %s25 = sadd.s32 1, %s16
    %s26 = scalar_select %p23, %s25, %s16
    %p27 = scmp.ge.s32.totalorder %s26, 1
    %s28 = scalar_select %p27, 0, %s26
    %s29 = ssub.s32 %s16, %s28
    %p30 = scmp.eq.s32.totalorder %s29, 0
    %s32 = sadd.s32 %s31, 1
    %s33 = scalar_select %p30, %s31, %s32
    %p36 = pneg %p30
    %p37 = scmp.eq.s32.totalorder %s9, 1
    %p38 = por %p36, %p37
    %p39 = scmp.ne.s32.totalorder %s31, %s34
    %p40 = scmp.eq.s32.totalorder %s9, 0
    %p41 = por %p39, %p40
    %p42 = scmp.ne.s32.totalorder %s31, %s34
    %p43 = scmp.eq.s32.totalorder %s14, 1
    %p44 = por %p42, %p43
    %p45 = scmp.ne.s32.totalorder %s34, %s35
    %p46 = scmp.eq.s32.totalorder %s14, 0
    %p47 = por %p45, %p46
    %p48 = scmp.ne.s32.totalorder %s34, %s35
    %p49 = scmp.eq.s32.totalorder %s15, 1
    %p50 = por %p48, %p49
    %p52 = scmp.ne.s32.totalorder %s35, %s51
    %p53 = scmp.eq.s32.totalorder %s15, 0
    %p54 = por %p52, %p53
    %s55 = sadd.s32 %s17, %s16
    %s56 = sadd.s32 %s24, %s28
    %s57 = ssub.s32 %s55, %s56
    %p58 = scmp.eq.s32.totalorder %s57, 0
    %s60 = sadd.s32 %s59, 1
    %s61 = scalar_select %p58, %s59, %s60
    %p64 = pneg %p58
    %p65 = scmp.eq.s32.totalorder %s9, 1
    %p66 = por %p64, %p65
    %p67 = scmp.ne.s32.totalorder %s59, %s62
    %p68 = scmp.eq.s32.totalorder %s9, 0
    %p69 = por %p67, %p68
    %p70 = scmp.ne.s32.totalorder %s59, %s62
    %p71 = scmp.eq.s32.totalorder %s14, 1
    %p72 = por %p70, %p71
    %p73 = scmp.ne.s32.totalorder %s62, %s63
    %p74 = scmp.eq.s32.totalorder %s14, 0
    %p75 = por %p73, %p74
    %p76 = scmp.ne.s32.totalorder %s62, %s63
    %p77 = scmp.eq.s32.totalorder %s15, 1
    %p78 = por %p76, %p77
    %p80 = scmp.ne.s32.totalorder %s63, %s79
    %p81 = scmp.eq.s32.totalorder %s15, 0
    %p82 = por %p80, %p81
    %s83 = sadd.s32 %s17, %s16
    %s84 = sadd.s32 %s24, %s28
    %s85 = ssub.s32 %s83, %s84
    %p86 = scmp.eq.s32.totalorder %s85, 0
    %s88 = sadd.s32 %s87, 1
    %s89 = scalar_select %p86, %s87, %s88
    %p92 = pneg %p86
    %p93 = scmp.eq.s32.totalorder %s9, 1
    %p94 = por %p92, %p93
    %p95 = scmp.ne.s32.totalorder %s87, %s90
    %p96 = scmp.eq.s32.totalorder %s9, 0
    %p97 = por %p95, %p96
    %p98 = scmp.ne.s32.totalorder %s87, %s90
    %p99 = scmp.eq.s32.totalorder %s14, 1
    %p100 = por %p98, %p99
    %p101 = scmp.ne.s32.totalorder %s90, %s91
    %p102 = scmp.eq.s32.totalorder %s14, 0
    %p103 = por %p101, %p102
    %p104 = scmp.ne.s32.totalorder %s90, %s91
    %p105 = scmp.eq.s32.totalorder %s15, 1
    %p106 = por %p104, %p105
    %p108 = scmp.ne.s32.totalorder %s91, %s107
    %p109 = scmp.eq.s32.totalorder %s15, 0
    %p110 = por %p108, %p109
    %s111 = sadd.s32 %s17, %s16
    %s112 = sadd.s32 %s24, %s28
    %s113 = ssub.s32 %s111, %s112
    %p114 = scmp.eq.s32.totalorder %s113, 0
    %s116 = sadd.s32 %s115, 1
    %s117 = scalar_select %p114, %s115, %s116
    %p120 = pneg %p114
    %p121 = scmp.eq.s32.totalorder %s9, 1
    %p122 = por %p120, %p121
    %p123 = scmp.ne.s32.totalorder %s115, %s118
    %p124 = scmp.eq.s32.totalorder %s9, 0
    %p125 = por %p123, %p124
    %p126 = scmp.ne.s32.totalorder %s115, %s118
    %p127 = scmp.eq.s32.totalorder %s14, 1
    %p128 = por %p126, %p127
    %p129 = scmp.ne.s32.totalorder %s118, %s119
    %p130 = scmp.eq.s32.totalorder %s14, 0
    %p131 = por %p129, %p130
    %p132 = scmp.ne.s32.totalorder %s118, %s119
    %p133 = scmp.eq.s32.totalorder %s15, 1
    %p134 = por %p132, %p133
    %p136 = scmp.ne.s32.totalorder %s119, %s135
    %p137 = scmp.eq.s32.totalorder %s15, 0
    %p138 = por %p136, %p137
    %p139 = scmp.le.s32.totalorder 1, %s9
    %p140 = scmp.lt.s32.totalorder %s9, 3
    %p141 = pnand %p139, %p140
    %p142 = pneg %p141
    // Predicated region
    $region9: #{intensity_estimator_forward.1} parent=5 // pred_check
      _
    $region10: #{intensity_estimator_forward.1} parent=5 // pred_check_branch
      %144 = sbr.rel (%p141) target = $region12
    $region11: #{intensity_estimator_forward.1} parent=5 // pred_region
      %s145 = ssub.s32 %s9, 1
      // Predicated region
      $region13: #{intensity_estimator_forward.1} parent=11 // pred_check
        %p146 = pneg %p47
      $region14: #{intensity_estimator_forward.1} parent=11 // pred_check_branch
        %148 = sbr.rel (%p146) target = $region16
      $region15: #{intensity_estimator_forward.1} parent=11 // pred_region
        %p149 = scmp.lt.s32.totalorder %s18, 0
        %s150 = scalar_select %p149, %s18, 0
        %s151 = smul.addr %s150, 2
        %s152 = smul.addr %s151, 8
        %s153 = scalar_lea.vmem %s0, %s152
      $region16: #{intensity_estimator_forward.1} parent=11 // pred_fallthru
        _
    $region12: #{intensity_estimator_forward.1} parent=5 // pred_fallthru
      _
    %p154 = scmp.lt.s32.totalorder %s9, 2
    // Predicated region
    $region17: #{intensity_estimator_forward.1} parent=5 // pred_check
      %p155 = pneg %p154
    $region18: #{intensity_estimator_forward.1} parent=5 // pred_check_branch
      %157 = sbr.rel (%p155) target = $region20
    $region19: #{intensity_estimator_forward.1} parent=5 // pred_region
      // Predicated region
      $region21: #{intensity_estimator_forward.1} parent=19 // pred_check
        %p158 = pneg %p69
      $region22: #{intensity_estimator_forward.1} parent=19 // pred_check_branch
        %160 = sbr.rel (%p158) target = $region24
      $region23: #{intensity_estimator_forward.1} parent=19 // pred_region
        %s161 = sadd.s32 %s17, %s16
        %p162 = scmp.lt.s32.totalorder %s161, 1
        %s163 = scalar_select %p162, %s161, 1
        %s164 = smul.addr %s163, 2
        %s165 = smul.addr %s164, 8
        %s166 = scalar_lea.vmem %s1, %s165
        %s167 = sadd.s32 %s17, %s16
      $region24: #{intensity_estimator_forward.1} parent=19 // pred_fallthru
        _
      // Predicated region
      $region25: #{intensity_estimator_forward.1} parent=19 // pred_check
        %p168 = pneg %p97
      $region26: #{intensity_estimator_forward.1} parent=19 // pred_check_branch
        %170 = sbr.rel (%p168) target = $region28
      $region27: #{intensity_estimator_forward.1} parent=19 // pred_region
        %s171 = sadd.s32 %s17, %s16
        %p172 = scmp.lt.s32.totalorder %s171, 1
        %s173 = scalar_select %p172, %s171, 1
        %s174 = smul.addr %s173, 8
        %s175 = scalar_lea.vmem %s2, %s174
        %s176 = sadd.s32 %s17, %s16
      $region28: #{intensity_estimator_forward.1} parent=19 // pred_fallthru
        _
    $region20: #{intensity_estimator_forward.1} parent=5 // pred_fallthru
      _
    %p177 = scmp.le.s32.totalorder 1, %s9
    %p178 = scmp.lt.s32.totalorder %s9, 3
    %p179 = pnand %p177, %p178
    %p180 = pneg %p179
    // Predicated region
    $region29: #{intensity_estimator_forward.1} parent=5 // pred_check
      _
    $region30: #{intensity_estimator_forward.1} parent=5 // pred_check_branch
      %182 = sbr.rel (%p179) target = $region32
    $region31: #{intensity_estimator_forward.1} parent=5 // pred_region
      %s183 = ssub.s32 %s9, 1
      %p184 = scmp.lt.s32.totalorder %s18, 0
      %s185 = scalar_select %p184, %s18, 0
      %s186 = smul.addr %s185, 2
      %s187 = smul.addr %s186, 8
      %s188 = scalar_lea.vmem %s0, %s187
      %p189 = pneg %p47
      %p190 = pneg %p44
      %s191 = sadd.s32 %s19, %s18
      %p192 = scmp.lt.s32.totalorder %s191, 1
      %s193 = scalar_select %p192, %s191, 1
      %s194 = smul.addr %s193, 2
      %s195 = smul.addr %s194, 8
      %s196 = scalar_lea.vmem %s1, %s195
      %p197 = pneg %p75
      %p198 = pneg %p72
      %s199 = sadd.s32 %s19, %s18
      %p200 = scmp.lt.s32.totalorder %s199, 1
      %s201 = scalar_select %p200, %s199, 1
      %s202 = smul.addr %s201, 8
      %s203 = scalar_lea.vmem %s2, %s202
      %p204 = pneg %p103
      %p205 = pneg %p100
      %p206 = pneg %p131
      %p207 = pneg %p128
      %s208 = sadd.s32 %s19, %s18
      %p209 = scmp.lt.s32.totalorder %s208, 1
      %s210 = scalar_select %p209, %s208, 1
      %s211 = smul.addr %s210, 8
      %s212 = scalar_lea.vmem %s3, %s211
      %p213 = scmp.lt.s32.totalorder %s18, 0
      %s214 = scalar_select %p213, %s18, 0
      %s215 = smul.addr %s214, 2
      %s216 = smul.addr %s215, 8
      %s217 = scalar_lea.vmem %s0, %s216
      %s218 = sadd.s32 %s19, %s18
      %p219 = scmp.lt.s32.totalorder %s218, 1
      %s220 = scalar_select %p219, %s218, 1
      %s221 = smul.addr %s220, 2
      %s222 = smul.addr %s221, 8
      %s223 = scalar_lea.vmem %s1, %s222
      %s224 = sadd.s32 %s19, %s18
      %s225 = sadd.s32 %s19, %s18
      %p226 = scmp.lt.s32.totalorder %s225, 1
      %s227 = scalar_select %p226, %s225, 1
      %s228 = smul.addr %s227, 8
      %s229 = scalar_lea.vmem %s2, %s228
      %s230 = sadd.s32 %s19, %s18
      %s231 = sadd.s32 %s19, %s18
      %p232 = scmp.lt.s32.totalorder %s231, 1
      %s233 = scalar_select %p232, %s231, 1
      %s234 = smul.addr %s233, 8
      %s235 = scalar_lea.vmem %s3, %s234
      %s236 = sadd.s32 %s19, %s18
      %v237 = vld [vmem:[%s217] sm:$0xff]
      %v238 = vld [vmem:[%s217 + $0x8] sm:$0xff]
      %v239 = vld [vmem:[%s223] sm:$0xff]
      %v240 = vld [vmem:[%s223 + $0x8] sm:$0xff]
      %v241 = vld [vmem:[%s229] sm:$0xff]
      %v242 = vmax.f32 %v241, 1.0
      %v243 = vmin.f32 %v242, 1000000.0
      %v244 = vmin.f32 %v242, 1000.0
      loop: start=0, step=1, limit=50
      $region33: #{intensity_estimator_forward.1} parent=31 // loop_pre_header
        _
      $region34: #{intensity_estimator_forward.1} parent=31 // loop_header
        %s246 = sphi 0, %s250
        %p247 = scmp.ge.s32.totalorder %s246, 50
        %v251 = vphi %v243, %v327
        %v252 = vphi %v244, %v330
      $region35: #{intensity_estimator_forward.1} parent=31 // loop_header_branch
        %249 = sbr.rel (%p247) target = $region39
      $region36: #{intensity_estimator_forward.1} parent=31 // loop_body
        %254 = vset.pattern.permute.xlu0 0
        %255 = vperm.xlu0 %254, %v251
        %v256 = vpop.permute.xlu0 %255
        %v258 = vmul.f32 %v256, %v237
        %v259 = vmul.f32 %v256, %v238
        %261 = vset.pattern.permute.xlu0 1
        %262 = vperm.xlu0 %261, %v252
        %v263 = vpop.permute.xlu0 %262
        %v265 = vadd.f32 %v258, %v263
        %v266 = vadd.f32 %v259, %v263
        %v267 = vmax.f32 %v265, 1e-06
        %v268 = vmax.f32 %v266, 1e-06
        %v269 = vrcp.pop %v267
        %v270 = vrcp.pop %v268
        %v271 = vmul.f32 %v239, %v269
        %v272 = vmul.f32 %v240, %v270
        %v273 = vsub.f32 %v271, 1.0
        %v274 = vsub.f32 %v272, 1.0
        %v275 = vmul.f32 %v271, %v269
        %v276 = vmul.f32 %v272, %v270
        %v277 = vmul.f32 %v237, %v275
        %v278 = vmul.f32 %v238, %v276
        %v279 = vmul.f32 %v237, %v277
        %v280 = vmul.f32 %v238, %v278
        %v281 = vadd.f32 %v279, %v280
        %282 = vadd.xlane.f32.xlu0 %v281
        %v283 = vpop.xlane.xlu0 %282
        %v284 = vadd.f32 %v277, %v278
        %285 = vadd.xlane.f32.xlu0 %v284
        %v286 = vpop.xlane.xlu0 %285
        %v287 = vadd.f32 %v275, %v276
        %288 = vadd.xlane.f32.xlu0 %v287
        %v289 = vpop.xlane.xlu0 %288
        %v290 = vmul.f32 %v237, %v273
        %v291 = vmul.f32 %v238, %v274
        %v292 = vadd.f32 %v290, %v291
        %293 = vadd.xlane.f32.xlu0 %v292
        %v294 = vpop.xlane.xlu0 %293
        %v295 = vadd.f32 %v273, %v274
        %296 = vadd.xlane.f32.xlu0 %v295
        %v297 = vpop.xlane.xlu0 %296
        %v298 = vmul.f32 %v283, %v283
        %v299 = vmul.f32 %v286, %v286
        %v300 = vadd.f32 %v298, %v299
        %v301 = vmul.f32 %v289, %v289
        %v302 = vadd.f32 %v299, %v301
        %v303 = vadd.f32 %v300, %v302
        %v304 = vmul.f32 %v303, 0.5
        %v305 = vmax.f32 %v304, 1e-30
        %v306 = vrcp.pop %v305
        %v307 = vmul.f32 %v300, %v306
        %v308 = vmul.f32 %v307, 100.0
        %v309 = vadd.f32 %v283, %v308
        %v310 = vmul.f32 %v302, %v306
        %v311 = vmul.f32 %v310, 100.0
        %v312 = vadd.f32 %v289, %v311
        %v313 = vmul.f32 %v309, %v312
        %v314 = vsub.f32 %v313, %v299
        %v315 = vmax.f32 %v314, 1e-30
        %v316 = vrcp.pop %v315
        %v317 = vmul.f32 %v312, %v294
        %v318 = vmul.f32 %v286, %v297
        %v319 = vsub.f32 %v317, %v318
        %v320 = vmul.f32 %v319, %v316
        %v321 = vmul.f32 %v309, %v297
        %v322 = vmul.f32 %v286, %v294
        %v323 = vsub.f32 %v321, %v322
        %v324 = vmul.f32 %v323, %v316
        %v325 = vadd.f32 %v251, %v320
        %v326 = vmax.f32 %v325, 1.0
        %v327 = vmin.f32 %v326, 1000000.0
        %v328 = vadd.f32 %v252, %v324
        %v329 = vmax.f32 %v328, 1.0
        %v330 = vmin.f32 %v329, 1000.0
      $region37: #{intensity_estimator_forward.1} parent=31 // loop_footer
        %s250 = sadd.s32 1, %s246
      $region38: #{intensity_estimator_forward.1} parent=31 // loop_footer_branch
        %245 = sbr.rel target = $region34
      $region39: #{intensity_estimator_forward.1} parent=31 // loop_exit
        _
      %332 = vset.pattern.permute.xlu0 0
      %333 = vperm.xlu0 %332, %v251
      %v334 = vpop.permute.xlu0 %333
      %v336 = vmul.f32 %v334, %v237
      %v337 = vmul.f32 %v334, %v238
      %339 = vset.pattern.permute.xlu0 1
      %340 = vperm.xlu0 %339, %v252
      %v341 = vpop.permute.xlu0 %340
      %v343 = vadd.f32 %v336, %v341
      %v344 = vadd.f32 %v337, %v341
      %v345 = vrcp.pop %v343
      %v346 = vmul.f32 1.0, %v345
      %v347 = vrcp.pop %v344
      %v348 = vmul.f32 1.0, %v347
      %v349 = vmul.f32 %v237, %v346
      %v350 = vmul.f32 %v238, %v348
      %v351 = vmul.f32 %v237, %v349
      %v352 = vmul.f32 %v238, %v350
      %v353 = vadd.f32 %v351, %v352
      %354 = vadd.xlane.f32.xlu0 %v353
      %v355 = vpop.xlane.xlu0 %354
      %v356 = vadd.f32 %v349, %v350
      %357 = vadd.xlane.f32.xlu0 %v356
      %v358 = vpop.xlane.xlu0 %357
      %v359 = vadd.f32 %v346, %v348
      %360 = vadd.xlane.f32.xlu0 %v359
      %v361 = vpop.xlane.xlu0 %360
      %v362 = vmul.f32 %v355, %v361
      %v363 = vmul.f32 %v358, %v358
      %v364 = vsub.f32 %v362, %v363
      %v365 = vmax.f32 %v364, 1e-30
      %v366 = vrcp.pop %v365
      %v367 = vmul.f32 1.0, %v366
      %v368 = vmul.f32 %v361, %v367
      %v369 = vrsqrt.pop %v368
      %v370 = vmul.f32 %v368, %v369
      %vm371 = vcmp.eq.f32.partialorder %v368, inf
      %v372 = vsel %vm371, %v368, %v370
      %vm373 = vcmp.eq.f32.partialorder %v368, 0.0
      %v374 = vand.u32 %v368, 2147483648
      %v375 = vsel %vm373, %v374, %v372
      %v376 = vmul.f32 %v355, %v367
      %v377 = vrsqrt.pop %v376
      %v378 = vmul.f32 %v376, %v377
      %vm379 = vcmp.eq.f32.partialorder %v376, inf
      %v380 = vsel %vm379, %v376, %v378
      %vm381 = vcmp.eq.f32.partialorder %v376, 0.0
      %v382 = vand.u32 %v376, 2147483648
      %v383 = vsel %vm381, %v382, %v380
      %v384 = vsub.f32 %v239, %v343
      %v385 = vsub.f32 %v240, %v344
      %v386 = vmul.f32 %v384, %v384
      %v387 = vmul.f32 %v385, %v385
      %v388 = vadd.f32 %v343, 0.01
      %v389 = vadd.f32 %v344, 0.01
      %v390 = vrcp.pop %v388
      %v391 = vmul.f32 %v386, %v390
      %v392 = vrcp.pop %v389
      %v393 = vmul.f32 %v387, %v392
      %v394 = vadd.f32 %v391, %v393
      %395 = vadd.xlane.f32.xlu0 %v394
      %v396 = vpop.xlane.xlu0 %395
      %vm397 = vcmask 7168
      %398 = vst.msk [vmem:[%s235] sm:$0xff] %vm397, %v251
      %vm399 = vcmask 15368
      %400 = vst.msk [vmem:[%s235] sm:$0xff] %vm399, %v252
      %vm401 = vcmask 23568
      %402 = vst.msk [vmem:[%s235] sm:$0xff] %vm401, %v375
      %vm403 = vcmask 31768
      %404 = vst.msk [vmem:[%s235] sm:$0xff] %vm403, %v383
      %vm405 = vcmask 39968
      %406 = vst.msk [vmem:[%s235] sm:$0xff] %vm405, %v396
      %vm407 = vcmask 64552
      %408 = vst.msk [vmem:[%s235] sm:$0xff] %vm407, 0.0
      %s409 = sadd.s32 %s19, %s18
      %p410 = scmp.lt.s32.totalorder %s409, 1
      %s411 = scalar_select %p410, %s409, 1
      %s412 = smul.addr %s411, 8
      %s413 = scalar_lea.vmem %s3, %s412
      // Predicated region
      $region40: #{intensity_estimator_forward.1} parent=31 // pred_check
        %p414 = pneg %p128
      $region41: #{intensity_estimator_forward.1} parent=31 // pred_check_branch
        %416 = sbr.rel (%p414) target = $region43
      $region42: #{intensity_estimator_forward.1} parent=31 // pred_region
        %s417 = sadd.s32 %s19, %s18
      $region43: #{intensity_estimator_forward.1} parent=31 // pred_fallthru
        _
    $region32: #{intensity_estimator_forward.1} parent=5 // pred_fallthru
      _
    %p418 = scmp.le.s32.totalorder 2, %s9
    // Predicated region
    $region44: #{intensity_estimator_forward.1} parent=5 // pred_check
      %p419 = pneg %p418
    $region45: #{intensity_estimator_forward.1} parent=5 // pred_check_branch
      %421 = sbr.rel (%p419) target = $region47
    $region46: #{intensity_estimator_forward.1} parent=5 // pred_region
      %s422 = ssub.s32 %s9, 2
      // Predicated region
      $region48: #{intensity_estimator_forward.1} parent=46 // pred_check
        %p423 = pneg %p134
      $region49: #{intensity_estimator_forward.1} parent=46 // pred_check_branch
        %425 = sbr.rel (%p423) target = $region51
      $region50: #{intensity_estimator_forward.1} parent=46 // pred_region
        %s426 = sadd.s32 %s21, %s20
        %p427 = scmp.lt.s32.totalorder %s426, 1
        %s428 = scalar_select %p427, %s426, 1
        %s429 = smul.addr %s428, 8
        %s430 = scalar_lea.vmem %s3, %s429
      $region51: #{intensity_estimator_forward.1} parent=46 // pred_fallthru
        _
    $region47: #{intensity_estimator_forward.1} parent=5 // pred_fallthru
      _
  $region6: #{intensity_estimator_forward.1} parent=0 // loop_footer
    %s13 = sadd.s32 1, %s9
  $region7: #{intensity_estimator_forward.1} parent=0 // loop_footer_branch
    %8 = sbr.rel target = $region3
  $region8: #{intensity_estimator_forward.1} parent=0 // loop_exit
    _

</llo_original>
